<compile_context>
chip_gen: v6e
topology: v6e:2x2x1
jax: 0.10.0
libtpu: 0.0.40
codegen_flags: <defaults>
</compile_context>

<pallas_src>
import functools

import jax
import jax.numpy as jnp
from jax.experimental import pallas as pl
from jax.experimental.pallas import tpu as pltpu

LANE = 128


def _round_up(a, m):
    return ((a + m - 1) // m) * m


def _vmem_capacity_bytes():
    """Physical VMEM per TensorCore; conservative (v7x-sized) fallback."""
    try:
        return int(pltpu.get_tpu_info().vmem_capacity_bytes)
    except Exception:
        return 64 << 20


def _budget_and_limit():
    cap = _vmem_capacity_bytes()
    if cap <= (64 << 20):
        # v7x: 64 MiB physical VMEM -> <= ~10 MiB live per step, 48 MiB limit.
        return 10 << 20, 48 << 20
    # v5e / v6e: 128 MiB physical VMEM -> bigger tiles, fewer grid steps.
    return 16 << 20, 64 << 20


def _pick_tile(B, F, in_itemsize, *, budget_bytes, vmem_limit_bytes,
               min_steps=4):
    """Pick the tile width t (multiple of 128 lanes) along the feature axis.

    Per-step live VMEM, per 128-lane block of the tile:
      * DMA buffers: (in + out) x double-buffered = 4 * Bp_in * 128 * itemsize
      * f32 compute scratch (upcast x + centered copy) ~= 2 * Bp_f32 * 128 * 4
    where Bp_* rounds B up to the sublane packing of that dtype.
    """
    bp_in = _round_up(B, max(8, 32 // in_itemsize))   # rows in input dtype
    bp_f32 = _round_up(B, 8)                          # rows of f32 scratch
    per_blk = LANE * (4 * bp_in * in_itemsize + 2 * bp_f32 * 4)

    if per_blk > vmem_limit_bytes:
        # TODO(synk): add a B-tiled two-pass variant (sum/sumsq accumulated
        # across an "arbitrary" inner grid axis) for batch sizes this large.
        raise ValueError(
            f"batch B={B} needs ~{per_blk} bytes of VMEM per 128-lane block, "
            f"which exceeds the scoped VMEM limit ({vmem_limit_bytes} bytes)")

    if F <= LANE:
        return F  # single block equal to the full feature axis

    max_blocks = max(1, budget_bytes // per_blk)
    n_blk = pl.cdiv(F, LANE)                          # total 128-lane blocks
    steps = max(min_steps, pl.cdiv(n_blk, max_blocks))
    steps = min(steps, n_blk)
    if steps > 1:
        steps = min(_round_up(steps, 2), n_blk)       # even -> both v7x TCs busy
    return pl.cdiv(n_blk, steps) * LANE


def _bn1d_kernel(x_ref, o_ref, *, eps, inv_bm1):
    # Block: (B, t). Reduce over axis 0 (batch); lanes carry features.
    # f32 accumulation kept in-kernel (v5e VPU has no bf16).
    x = x_ref[...].astype(jnp.float32)
    mean = jnp.mean(x, axis=0, keepdims=True)
    diff = x - mean
    sumsq = jnp.sum(diff * diff, axis=0, keepdims=True)
    # torch.var default is unbiased (ddof=1): 1/(B-1) folded into the rsqrt
    # argument (EUP op, off the mem-bound critical path).
    inv_std = jax.lax.rsqrt(sumsq * jnp.float32(inv_bm1) + jnp.float32(eps))
    o_ref[...] = (diff * inv_std).astype(o_ref.dtype)


def batchnorm_1d_pallas(x, *, num_features, eps=1e-6, training=True, coin=0.0):
    """Pallas implementation of batchnorm_1d.forward.

    `coin` plays the role of `random.random()`: if coin > 0.5 (or not
    training) the input is returned unchanged, mirroring the PyTorch module.
    Both `training` and `coin` must be concrete host values (the gate is
    Python control flow, baked at trace time under jit).
    """
    if not training:
        return x
    if coin > 0.5:
        return x

    assert x.ndim == 3
    B, N, C = x.shape
    assert C == num_features
    assert B >= 2, "unbiased variance (ddof=1) needs B >= 2 (as in torch)"

    # Flatten (N, C) -> lane-dense feature axis; mean/var are per (n, c)
    # element so the math is unchanged by the reshape.
    F = N * C
    xf = x.reshape(B, F)
    in_itemsize = x.dtype.itemsize

    budget_bytes, vmem_limit = _budget_and_limit()
    t = _pick_tile(B, F, in_itemsize,
                   budget_bytes=budget_bytes, vmem_limit_bytes=vmem_limit)
    grid = (pl.cdiv(F, t),)

    kernel = functools.partial(
        _bn1d_kernel, eps=float(eps), inv_bm1=1.0 / float(B - 1))

    out = pl.pallas_call(
        kernel,
        out_shape=jax.ShapeDtypeStruct((B, F), x.dtype),
        grid=grid,
        in_specs=[pl.BlockSpec((B, t), lambda i: (0, i))],
        out_specs=pl.BlockSpec((B, t), lambda i: (0, i)),
        compiler_params=pltpu.CompilerParams(
            dimension_semantics=("parallel",),
            vmem_limit_bytes=vmem_limit,
        ),
    )(xf)

    return out.reshape(B, N, C)


if __name__ == "__main__":
    key = jax.random.PRNGKey(0)
    k1, k2 = jax.random.split(key)

    # Deterministic stand-in for the module's random identity gate: force the
    # normalization (compute) branch so the kernel actually runs.
    coin = 0.0

    # Case 1: lane-aligned feature axis (F = N*C = 256).
    B, N, C = 2, 8, 32
    x = jax.random.normal(k1, (B, N, C), dtype=jnp.float32)
    out = batchnorm_1d_pallas(x, num_features=C, eps=1e-6,
                              training=True, coin=coin)
    jax.block_until_ready(out)
    mean_ref = jnp.mean(x, axis=0, keepdims=True)
    var_ref = jnp.var(x, axis=0, keepdims=True, ddof=1)
    ref = (x - mean_ref) / jnp.sqrt(var_ref + 1e-6)
    assert out.shape == x.shape and out.dtype == x.dtype
    assert jnp.allclose(out, ref, atol=1e-5, rtol=1e-5)

    # Case 2: ragged feature axis (F = N*C = 168, not a multiple of 128) —
    # exercises the no-pad / ragged-last-block path from the review.
    B2, N2, C2 = 4, 7, 24
    x2 = jax.random.normal(k2, (B2, N2, C2), dtype=jnp.float32)
    out2 = batchnorm_1d_pallas(x2, num_features=C2, eps=1e-6,
                               training=True, coin=coin)
    jax.block_until_ready(out2)
    mean2 = jnp.mean(x2, axis=0, keepdims=True)
    var2 = jnp.var(x2, axis=0, keepdims=True, ddof=1)
    ref2 = (x2 - mean2) / jnp.sqrt(var2 + 1e-6)
    assert jnp.allclose(out2, ref2, atol=1e-5, rtol=1e-5)

    # Identity paths (eval mode / coin > 0.5) return the input unchanged.
    assert batchnorm_1d_pallas(x, num_features=C, training=False) is x
    assert batchnorm_1d_pallas(x, num_features=C, training=True, coin=0.9) is x

    print("KERNEL_OK")
</pallas_src>

<mosaic_0001>
module attributes {stable_mosaic.version = 11 : i64} {
  func.func @_bn1d_kernel(%arg0: i32, %arg1: memref<2x128xf32, #tpu.memory_space<vmem>>, %arg2: memref<2x128xf32, #tpu.memory_space<vmem>>) attributes {dimension_semantics = [#tpu.dimension_semantics<parallel>], iteration_bounds = array<i64: 2>, scalar_prefetch = 0 : i64, scratch_operands = 0 : i64, tpu.core_type = #tpu.core_type<tc>, window_params = [{transform_indices = @transform_0, window_bounds = array<i64: 2, 128>}, {transform_indices = @transform_1, window_bounds = array<i64: 2, 128>}]} {
    %c0 = arith.constant 0 : index
    %c0_0 = arith.constant 0 : index
    %0 = vector.load %arg1[%c0, %c0_0] : memref<2x128xf32, #tpu.memory_space<vmem>>, vector<2x128xf32>
    %cst = arith.constant dense<0.000000e+00> : vector<128xf32>
    %1 = vector.multi_reduction <add>, %0, %cst [0] : vector<2x128xf32> to vector<128xf32>
    %2 = vector.shape_cast %1 : vector<128xf32> to vector<1x128xf32>
    %cst_1 = arith.constant 2.000000e+00 : f32
    %3 = vector.broadcast %cst_1 : f32 to vector<1x128xf32>
    %4 = arith.divf %2, %3 : vector<1x128xf32>
    %5 = vector.broadcast %4 : vector<1x128xf32> to vector<2x128xf32>
    %6 = arith.subf %0, %5 : vector<2x128xf32>
    %7 = arith.mulf %6, %6 : vector<2x128xf32>
    %cst_2 = arith.constant dense<0.000000e+00> : vector<128xf32>
    %8 = vector.multi_reduction <add>, %7, %cst_2 [0] : vector<2x128xf32> to vector<128xf32>
    %9 = vector.shape_cast %8 : vector<128xf32> to vector<1x128xf32>
    %cst_3 = arith.constant 1.000000e+00 : f32
    %10 = vector.broadcast %cst_3 : f32 to vector<1x128xf32>
    %11 = arith.mulf %9, %10 : vector<1x128xf32>
    %cst_4 = arith.constant 9.99999997E-7 : f32
    %12 = vector.broadcast %cst_4 : f32 to vector<1x128xf32>
    %13 = arith.addf %11, %12 : vector<1x128xf32>
    %14 = math.rsqrt %13 : vector<1x128xf32>
    %15 = vector.broadcast %14 : vector<1x128xf32> to vector<2x128xf32>
    %16 = arith.mulf %6, %15 : vector<2x128xf32>
    %c0_5 = arith.constant 0 : index
    %c0_6 = arith.constant 0 : index
    %17 = vector.load %arg2[%c0_5, %c0_6] : memref<2x128xf32, #tpu.memory_space<vmem>>, vector<2x128xf32>
    tpu.vector_store %arg2[%c0_5, %c0_6], %16 {strides = array<i32>} : memref<2x128xf32, #tpu.memory_space<vmem>>, vector<2x128xf32>,
    return
  }
  func.func @transform_0(%arg0: i32) -> (i32, i32) {
    %c0_i32 = arith.constant 0 : i32
    %c0_i32_0 = arith.constant 0 : i32
    return %c0_i32, %arg0 : i32, i32
  }
  func.func @transform_1(%arg0: i32) -> (i32, i32) {
    %c0_i32 = arith.constant 0 : i32
    %c0_i32_0 = arith.constant 0 : i32
    return %c0_i32, %arg0 : i32, i32
  }
}

</mosaic_0001>

<llo_original>
// kernel: tpu_custom_call.1
$region0: #{tpu_custom_call.1}
  #allocation0 [shape = 'u32[]', space=smem, size = 0x4, offset = 0x4, fixed_abs, tag = 'smem constant byte address 0x4 - core index']
  #allocation1 [shape = 'u32[144,128]{1,0:T(1,128)}', space=vmem, size = 0x12000, scoped, tag = 'internal scratch']
  %s0 = inlined_call_operand.hbm [shape: f32[2,256], index: 0, kind: input, shape index: {}]
  %s1 = inlined_call_operand.hbm [shape: f32[2,256], index: 1, kind: output, shape index: {}]
  %s2 = sld [smem:[#allocation0]]
  $region41: #{tpu_custom_call.1} parent=0
    _
  %s4 = ssub.s32 1, %s2
  %s5 = scalar_select 0, %s4, %s2
  $region1: #{tpu_custom_call.1} parent=0
    #allocation2 [shape = 'u8[2048]{0}', space=vmem, size = 0x800, scoped, tag = 'input window, operand 0']
    #allocation3 [shape = 's32[2]{0}', space=sflag, size = 0x8, scoped, tag = 'scoped memory for tpu_custom_call.1']
    #allocation4 [shape = 's32[2]{0}', space=sflag, size = 0x8, scoped, tag = 'scoped memory for tpu_custom_call.1']
    #allocation5 [shape = 'u8[2048]{0}', space=vmem, size = 0x800, scoped, tag = 'output window, operand 0']
    %6 = vsyncpa [#allocation3], 0
    %s7 = scalar_lea.sflag [#allocation3], 1
    %8 = vsyncpa %s7, 0
    %9 = vsyncpa [#allocation4], 0
    %s10 = scalar_lea.sflag [#allocation4], 1
    %11 = vsyncpa %s10, 0
    loop: start=0, step=1, limit=4
    $region2: #{tpu_custom_call.1} parent=1 // loop_pre_header
      _
    $region3: #{tpu_custom_call.1} parent=1 // loop_header
      %s13 = sphi 0, %s17
      %p14 = scmp.ge.s32.totalorder %s13, 4
      %s23 = sphi 0, %s25
      %s26 = sphi 0, %s23
      %s27 = sphi 0, %s26
      %s43 = sphi 0, %s27
      %s49 = sphi 0, %s51
      %s52 = sphi 0, %s49
      %s53 = sphi 0, %s52
      %s69 = sphi 0, %s53
    $region4: #{tpu_custom_call.1} parent=1 // loop_header_branch
      %16 = sbr.rel (%p14) target = $region8
    $region5: #{tpu_custom_call.1} parent=1 // loop_body
      %s18 = ssub.s32 %s13, 1
      %s19 = ssub.s32 %s13, 2
      %s20 = sadd.s32 %s13, 1
      %s21 = ssub.s32 %s13, %s20
      %p22 = scmp.eq.s32.totalorder %s21, 0
      %s24 = sadd.s32 %s23, 1
      %s25 = scalar_select %p22, %s23, %s24
      %p28 = pneg %p22
      %p29 = scmp.eq.s32.totalorder %s13, 1
      %p30 = por %p28, %p29
      %p31 = scmp.ne.s32.totalorder %s23, %s26
      %p32 = scmp.eq.s32.totalorder %s13, 0
      %p33 = por %p31, %p32
      %p34 = scmp.ne.s32.totalorder %s23, %s26
      %p35 = scmp.eq.s32.totalorder %s18, 1
      %p36 = por %p34, %p35
      %p37 = scmp.ne.s32.totalorder %s26, %s27
      %p38 = scmp.eq.s32.totalorder %s18, 0
      %p39 = por %p37, %p38
      %p40 = scmp.ne.s32.totalorder %s26, %s27
      %p41 = scmp.eq.s32.totalorder %s19, 1
      %p42 = por %p40, %p41
      %p44 = scmp.ne.s32.totalorder %s27, %s43
      %p45 = scmp.eq.s32.totalorder %s19, 0
      %p46 = por %p44, %p45
      %s47 = ssub.s32 %s13, %s20
      %p48 = scmp.eq.s32.totalorder %s47, 0
      %s50 = sadd.s32 %s49, 1
      %s51 = scalar_select %p48, %s49, %s50
      %p54 = pneg %p48
      %p55 = scmp.eq.s32.totalorder %s13, 1
      %p56 = por %p54, %p55
      %p57 = scmp.ne.s32.totalorder %s49, %s52
      %p58 = scmp.eq.s32.totalorder %s13, 0
      %p59 = por %p57, %p58
      %p60 = scmp.ne.s32.totalorder %s49, %s52
      %p61 = scmp.eq.s32.totalorder %s18, 1
      %p62 = por %p60, %p61
      %p63 = scmp.ne.s32.totalorder %s52, %s53
      %p64 = scmp.eq.s32.totalorder %s18, 0
      %p65 = por %p63, %p64
      %p66 = scmp.ne.s32.totalorder %s52, %s53
      %p67 = scmp.eq.s32.totalorder %s19, 1
      %p68 = por %p66, %p67
      %p70 = scmp.ne.s32.totalorder %s53, %s69
      %p71 = scmp.eq.s32.totalorder %s19, 0
      %p72 = por %p70, %p71
      %p73 = scmp.le.s32.totalorder 1, %s13
      %p74 = scmp.lt.s32.totalorder %s13, 3
      %p75 = pnand %p73, %p74
      %p76 = pneg %p75
      // Predicated region
      $region9: #{tpu_custom_call.1} parent=5 // pred_check
        _
      $region10: #{tpu_custom_call.1} parent=5 // pred_check_branch
        %78 = sbr.rel (%p75) target = $region12
      $region11: #{tpu_custom_call.1} parent=5 // pred_region
        %s79 = ssub.s32 %s13, 1
      $region12: #{tpu_custom_call.1} parent=5 // pred_fallthru
        _
      %p80 = scmp.lt.s32.totalorder %s13, 2
      // Predicated region
      $region13: #{tpu_custom_call.1} parent=5 // pred_check
        %p81 = pneg %p80
      $region14: #{tpu_custom_call.1} parent=5 // pred_check_branch
        %83 = sbr.rel (%p81) target = $region16
      $region15: #{tpu_custom_call.1} parent=5 // pred_region
        // Predicated region
        $region17: #{tpu_custom_call.1} parent=15 // pred_check
          %p84 = pneg %p33
        $region18: #{tpu_custom_call.1} parent=15 // pred_check_branch
          %86 = sbr.rel (%p84) target = $region20
        $region19: #{tpu_custom_call.1} parent=15 // pred_region
          %s87 = sand.u32 %s23, 1
          %s88 = scalar_lea.sflag [#allocation3], %s87
          %s89 = sand.u32 %s23, 1
          %s90 = smul.addr %s89, 2
          %s91 = scalar_lea.vmem [#allocation2], %s90
          %s93 = ssub.s32 32, 32
          %94 = vsyncadd %s88, %s93
          %s95 = smul.addr %s13, 32
          %s96 = scalar_lea.hbm %s0, %s95
          %s98 = sshll.u32 %s91, 4
          %s99 = int_to_ptr.vmem [resolvable:$true] %s98
          %101 = dma.hbm_to_vmem [thread:$0]  %s96, 32, %s99, %s88
        $region20: #{tpu_custom_call.1} parent=15 // pred_fallthru
          _
      $region16: #{tpu_custom_call.1} parent=5 // pred_fallthru
        _
      %p102 = scmp.le.s32.totalorder 1, %s13
      %p103 = scmp.lt.s32.totalorder %s13, 3
      %p104 = pnand %p102, %p103
      %p105 = pneg %p104
      // Predicated region
      $region21: #{tpu_custom_call.1} parent=5 // pred_check
        _
      $region22: #{tpu_custom_call.1} parent=5 // pred_check_branch
        %107 = sbr.rel (%p104) target = $region24
      $region23: #{tpu_custom_call.1} parent=5 // pred_region
        %s108 = ssub.s32 %s13, 1
        %s109 = sand.u32 %s26, 1
        %s110 = scalar_lea.sflag [#allocation3], %s109
        %s111 = sand.u32 %s26, 1
        %s112 = smul.addr %s111, 2
        %s113 = scalar_lea.vmem [#allocation2], %s112
        // Predicated region
        $region25: #{tpu_custom_call.1} parent=23 // pred_check
          %p114 = pneg %p39
        $region26: #{tpu_custom_call.1} parent=23 // pred_check_branch
          %116 = sbr.rel (%p114) target = $region28
        $region27: #{tpu_custom_call.1} parent=23 // pred_region
          %117 = dma.done %s110, 32
        $region28: #{tpu_custom_call.1} parent=23 // pred_fallthru
          _
        %s118 = sand.u32 %s26, 1
        %s119 = scalar_lea.sflag [#allocation3], %s118
        %s120 = sand.u32 %s26, 1
        %s121 = smul.addr %s120, 2
        %s122 = scalar_lea.vmem [#allocation2], %s121
        %p123 = pneg %p39
        %p124 = pneg %p36
        %p125 = pneg %p65
        %p126 = pneg %p62
        %s127 = sand.u32 %s52, 1
        %s128 = scalar_lea.sflag [#allocation4], %s127
        %s129 = sand.u32 %s52, 1
        %s130 = smul.addr %s129, 2
        %s131 = scalar_lea.vmem [#allocation5], %s130
        %v132 = vld [vmem:[%s113] sm:$0x3]
        %vm133 = vcmask 1041408
        %v134 = vsel %vm133, %v132, 0.0
        %v135 = vrot.slane %v134, 4
        %v136 = vadd.f32 %v134, %v135
        %v137 = vrot.slane %v136, 2
        %v138 = vadd.f32 %v136, %v137
        %v139 = vrot.slane %v138, 1
        %v140 = vadd.f32 %v138, %v139
        %v141 = vrcp.pop 2.0
        %v142 = vmul.f32 %v140, %v141
        %v143 = vsub.f32 %v132, %v142
        %v144 = vmul.f32 %v143, %v143
        %v145 = vsel %vm133, %v144, 0.0
        %v146 = vrot.slane %v145, 4
        %v147 = vadd.f32 %v145, %v146
        %v148 = vrot.slane %v147, 2
        %v149 = vadd.f32 %v147, %v148
        %v150 = vrot.slane %v149, 1
        %v151 = vadd.f32 %v149, %v150
        %v152 = vadd.f32 %v151, 1e-06
        %v153 = vrsqrt.pop %v152
        %v154 = vmul.f32 %v143, %v153
        %155 = vst [vmem:[%s131] sm:$0x3] %v154
        %s156 = sand.u32 %s52, 1
        %s157 = scalar_lea.sflag [#allocation4], %s156
        %s158 = sand.u32 %s52, 1
        %s159 = smul.addr %s158, 2
        %s160 = scalar_lea.vmem [#allocation5], %s159
        // Predicated region
        $region29: #{tpu_custom_call.1} parent=23 // pred_check
          %p161 = pneg %p62
        $region30: #{tpu_custom_call.1} parent=23 // pred_check_branch
          %163 = sbr.rel (%p161) target = $region32
        $region31: #{tpu_custom_call.1} parent=23 // pred_region
          %s165 = ssub.s32 32, 32
          %166 = vsyncadd %s157, %s165
          %s167 = smul.addr %s18, 32
          %s168 = scalar_lea.hbm %s1, %s167
          %s170 = sshll.u32 %s160, 4
          %s171 = int_to_ptr.vmem [resolvable:$true] %s170
          %173 = dma.vmem_to_hbm [thread:$0]  %s171, 32, %s168, %s157
        $region32: #{tpu_custom_call.1} parent=23 // pred_fallthru
          _
      $region24: #{tpu_custom_call.1} parent=5 // pred_fallthru
        _
      %p174 = scmp.le.s32.totalorder 2, %s13
      // Predicated region
      $region33: #{tpu_custom_call.1} parent=5 // pred_check
        %p175 = pneg %p174
      $region34: #{tpu_custom_call.1} parent=5 // pred_check_branch
        %177 = sbr.rel (%p175) target = $region36
      $region35: #{tpu_custom_call.1} parent=5 // pred_region
        %s178 = ssub.s32 %s13, 2
        // Predicated region
        $region37: #{tpu_custom_call.1} parent=35 // pred_check
          %p179 = pneg %p68
        $region38: #{tpu_custom_call.1} parent=35 // pred_check_branch
          %181 = sbr.rel (%p179) target = $region40
        $region39: #{tpu_custom_call.1} parent=35 // pred_region
          %s182 = sand.u32 %s53, 1
          %s183 = scalar_lea.sflag [#allocation4], %s182
          %s184 = sand.u32 %s53, 1
          %s185 = smul.addr %s184, 2
          %s186 = scalar_lea.vmem [#allocation5], %s185
          %187 = dma.done %s183, 32
        $region40: #{tpu_custom_call.1} parent=35 // pred_fallthru
          _
      $region36: #{tpu_custom_call.1} parent=5 // pred_fallthru
        _
    $region6: #{tpu_custom_call.1} parent=1 // loop_footer
      %s17 = sadd.s32 1, %s13
    $region7: #{tpu_custom_call.1} parent=1 // loop_footer_branch
      %12 = sbr.rel target = $region3
    $region8: #{tpu_custom_call.1} parent=1 // loop_exit
      _
    %188 = vsyncpa [#allocation3], 1
    %s189 = scalar_lea.sflag [#allocation3], 1
    %190 = vsyncpa %s189, 1
    %191 = vsyncpa [#allocation4], 1
    %s192 = scalar_lea.sflag [#allocation4], 1
    %193 = vsyncpa %s192, 1

</llo_original>
